<compile_context>
chip_gen: v7x
topology: tpu7x:2x2x1
jax: 0.10.0
libtpu: 0.0.40
codegen_flags: <defaults>
</compile_context>

<pallas_src>
import jax
import jax.numpy as jnp
from jax import lax
from jax.experimental import pallas as pl
from jax.experimental.pallas import tpu as pltpu


def _round_up(x, m):
    return ((x + m - 1) // m) * m


_VMEM_LIMIT = 32 * 1024 * 1024  # safe on v7x (64 MiB physical); plenty of headroom on v5e/v6e


# ----------------------------------------------------------------------------
# Pallas kernels
# ----------------------------------------------------------------------------
def _input_proj_kernel(x_ref, w_ref, b_ref, o_ref):
    """memory^T tile: o[D, tile] = Wt[D, C] @ x[C, tile] + b[D, 1].

    x is an f32 NCHW column block; the f32->bf16 cast is done in VMEM so the
    wrapper never writes a cast/transposed copy of the activation to HBM.
    """
    x = x_ref[...].astype(jnp.bfloat16)                                   # [C, tile]
    acc = jnp.dot(w_ref[...], x, preferred_element_type=jnp.float32)      # [D, tile]
    o_ref[...] = (acc + b_ref[...]).astype(o_ref.dtype)


def _decoder_kernel(qemb_ref, mem_ref, maskb_ref,
                    cw1_ref, cb1_ref, w2_ref, b2_ref, w3_ref, b3_ref,
                    logits_ref, boxes_ref, tgt_ref):
    """One (batch, query-tile, decoder-layer) step: masked cross-attn + fused heads.

    Grid = (B, Qtiles, L); batch and query tiles are parallel, layers sequential.
    mem_ref is the layer-resident memory in [D, S] layout so both matmuls need no
    per-layer transpose.  tgt is carried across layers in VMEM scratch.
    """
    l = pl.program_id(2)

    @pl.when(l == 0)
    def _():
        tgt_ref[...] = qemb_ref[...].astype(jnp.float32)

    tgt = tgt_ref[...]                                   # [tq, D] f32
    d = tgt.shape[-1]
    scale = 1.0 / (float(d) ** 0.5)

    # scores: [tq, S] = (tgt * scale) @ mem[D, S]   (scale folded into the small operand)
    q_bf = (tgt * scale).astype(jnp.bfloat16)
    scores = jnp.dot(q_bf, mem_ref[...], preferred_element_type=jnp.float32)
    scores = scores + maskb_ref[...]                     # precomputed -1e9 * mask, [1, S]

    # numerically-stable softmax over the memory axis; EUP reciprocal for the divide
    scores = scores - jnp.max(scores, axis=-1, keepdims=True)
    p = jnp.exp(scores)
    p = p * pl.reciprocal(jnp.sum(p, axis=-1, keepdims=True), approx=True)

    # update: [tq, D] = p[tq, S] @ mem[D, S]^T  (rhs-transposed contraction, MXU-native)
    upd = lax.dot_general(p.astype(jnp.bfloat16), mem_ref[...],
                          dimension_numbers=(((1,), (1,)), ((), ())),
                          preferred_element_type=jnp.float32)
    tgt = tgt + upd
    tgt_ref[...] = tgt

    # ---- fused heads (per layer, for aux_loss); hs never touches HBM ----
    tgt_bf = tgt.astype(jnp.bfloat16)
    cpad = logits_ref.shape[-1]

    # single matmul for [class_embed | bbox_MLP layer 1]; split at the 128-lane boundary
    fused = jnp.dot(tgt_bf, cw1_ref[...], preferred_element_type=jnp.float32) + cb1_ref[...]
    logits_ref[...] = fused[:, :cpad].astype(logits_ref.dtype)

    h = jnp.maximum(fused[:, cpad:], 0.0)
    h = jnp.dot(h.astype(jnp.bfloat16), w2_ref[...], preferred_element_type=jnp.float32) + b2_ref[...]
    h = jnp.maximum(h, 0.0)
    h = jnp.dot(h.astype(jnp.bfloat16), w3_ref[...], preferred_element_type=jnp.float32) + b3_ref[...]
    boxes_ref[...] = jax.nn.sigmoid(h).astype(boxes_ref.dtype)


# ----------------------------------------------------------------------------
# Wrappers (glue)
# ----------------------------------------------------------------------------
def pallas_input_proj(feat3, w, b, *, max_tile=1024, out_dtype=jnp.bfloat16):
    """1x1 Conv2d(C -> D) on an NCHW feature map, returned as memory in [B, D, HW].

    feat3: [B, C, HW] f32 (free reshape of NCHW).  No wrapper-side transpose,
    cast or pad passes; the grid clips the last HW tile instead of padding.
    """
    B, C, HW = feat3.shape
    D = w.shape[1]
    tile_n = HW if HW <= max_tile else max_tile          # max_tile is a multiple of 128
    n_tiles = pl.cdiv(HW, tile_n)

    wt = jnp.transpose(w).astype(jnp.bfloat16)           # [D, C], tiny
    b2 = b.reshape(D, 1).astype(jnp.float32)

    return pl.pallas_call(
        _input_proj_kernel,
        out_shape=jax.ShapeDtypeStruct((B, D, HW), out_dtype),
        grid=(B, n_tiles),
        in_specs=[
            pl.BlockSpec((pl.Squeezed(), C, tile_n), lambda bi, i: (bi, 0, i)),
            pl.BlockSpec((D, C), lambda bi, i: (0, 0)),   # resident weight
            pl.BlockSpec((D, 1), lambda bi, i: (0, 0)),   # resident bias
        ],
        out_specs=pl.BlockSpec((pl.Squeezed(), D, tile_n), lambda bi, i: (bi, 0, i)),
        compiler_params=pltpu.CompilerParams(
            dimension_semantics=("parallel", "parallel"),
            vmem_limit_bytes=_VMEM_LIMIT,
        ),
    )(feat3, wt, b2)


def pallas_decoder_with_heads(query_embed, memory_ds, mask_flat, params, num_layers):
    """Decoder stand-in + fused class/bbox heads.

    memory_ds: [B, D, S] bf16 (from pallas_input_proj), mask_flat: [B, S] (1.0 on padded).
    Returns (outputs_class [L,B,Q,n_cls], outputs_coord [L,B,Q,4]).
    """
    Q, D = query_embed.shape
    B, _, S = memory_ds.shape
    n_cls = params["class_w"].shape[1]
    CPAD = _round_up(n_cls, 128)
    BPAD = 128

    # query-tile axis so both v7x TensorCores stay busy even at B == 1
    tq = 128 if (Q % 128 == 0) else Q
    n_qt = Q // tq

    mask_bias = (mask_flat.astype(jnp.float32) * (-1e9)).reshape(B, 1, S)
    qemb = query_embed.astype(jnp.float32)

    # fuse class head with the first bbox-MLP matmul; lane-pad heads to 128
    cw = jnp.zeros((D, CPAD), jnp.float32).at[:, :n_cls].set(params["class_w"])
    cb = jnp.zeros((1, CPAD), jnp.float32).at[:, :n_cls].set(params["class_b"].reshape(1, -1))
    cw1 = jnp.concatenate([cw, params["bbox_w1"]], axis=1).astype(jnp.bfloat16)   # [D, CPAD+D]
    cb1 = jnp.concatenate([cb, params["bbox_b1"].reshape(1, -1)], axis=1).astype(jnp.float32)
    w2 = params["bbox_w2"].astype(jnp.bfloat16)
    b2 = params["bbox_b2"].reshape(1, -1).astype(jnp.float32)
    w3 = jnp.zeros((D, BPAD), jnp.bfloat16).at[:, :4].set(params["bbox_w3"].astype(jnp.bfloat16))
    b3 = jnp.zeros((1, BPAD), jnp.float32).at[:, :4].set(params["bbox_b3"].reshape(1, -1))

    const3 = lambda b, qt, l: (0, 0)
    logits_pad, boxes_pad = pl.pallas_call(
        _decoder_kernel,
        out_shape=(
            jax.ShapeDtypeStruct((num_layers, B, Q, CPAD), jnp.float32),
            jax.ShapeDtypeStruct((num_layers, B, Q, BPAD), jnp.float32),
        ),
        grid=(B, n_qt, num_layers),
        in_specs=[
            pl.BlockSpec((tq, D), lambda b, qt, l: (qt, 0)),                      # query embeddings
            pl.BlockSpec((pl.Squeezed(), D, S), lambda b, qt, l: (b, 0, 0)),      # memory [D, S], layer-resident
            pl.BlockSpec((pl.Squeezed(), 1, S), lambda b, qt, l: (b, 0, 0)),      # precomputed mask bias
            pl.BlockSpec((D, CPAD + D), const3),                                  # fused class + bbox-l1 weight
            pl.BlockSpec((1, CPAD + D), const3),
            pl.BlockSpec((D, D), const3),                                         # bbox MLP (resident)
            pl.BlockSpec((1, D), const3),
            pl.BlockSpec((D, BPAD), const3),
            pl.BlockSpec((1, BPAD), const3),
        ],
        out_specs=(
            pl.BlockSpec((pl.Squeezed(), pl.Squeezed(), tq, CPAD),
                         lambda b, qt, l: (l, b, qt, 0)),
            pl.BlockSpec((pl.Squeezed(), pl.Squeezed(), tq, BPAD),
                         lambda b, qt, l: (l, b, qt, 0)),
        ),
        scratch_shapes=[pltpu.VMEM((tq, D), jnp.float32)],                        # carried query state
        compiler_params=pltpu.CompilerParams(
            dimension_semantics=("parallel", "parallel", "arbitrary"),
            vmem_limit_bytes=_VMEM_LIMIT,
        ),
    )(qemb, memory_ds, mask_bias, cw1, cb1, w2, b2, w3, b3)

    return logits_pad[..., :n_cls], boxes_pad[..., :4]


def spdetr_forward(feat, mask, params, aux_loss=True):
    """SPDETR.forward, starting from the backbone feature map `feat` (NCHW).

    feat: [B, C_backbone, H, W]  (output of build_backbone, external)
    mask: [B, H, W] bool, True on padded pixels
    """
    B, C, H, W = feat.shape

    # input_proj: 1x1 Conv2d(C_backbone -> hidden_dim) == per-pixel channel matmul.
    # memory is produced directly in [B, D, HW] bf16 (the layout the decoder consumes).
    feat3 = feat.reshape(B, C, H * W)
    memory_ds = pallas_input_proj(feat3, params["input_proj_w"], params["input_proj_b"])

    # mask.flatten(1)
    mask_flat = mask.reshape(B, H * W).astype(jnp.float32)

    # TODO(synk): build_backbone / build_transformer / build_position_encoding / src_proj are
    # external modules not provided; the transformer is replaced by a deterministic stand-in of
    # num_decoder_layers masked cross-attention layers; class/bbox heads are fused in.
    L = params["num_decoder_layers"]
    outputs_class, outputs_coord = pallas_decoder_with_heads(
        params["query_embed"], memory_ds, mask_flat, params, L)

    out = {"pred_logits": outputs_class[-1], "pred_boxes": outputs_coord[-1]}
    if aux_loss:
        out["aux_outputs"] = [
            {"pred_logits": a, "pred_boxes": b}
            for a, b in zip(outputs_class[:-1], outputs_coord[:-1])
        ]
    return out


# ----------------------------------------------------------------------------
# Deterministic parameter construction
# ----------------------------------------------------------------------------
def make_params(key, c_backbone, hidden_dim, num_queries, num_classes, num_decoder_layers):
    ks = jax.random.split(key, 10)
    s = 0.02
    return {
        "input_proj_w": s * jax.random.normal(ks[0], (c_backbone, hidden_dim), jnp.float32),
        "input_proj_b": s * jax.random.normal(ks[1], (hidden_dim,), jnp.float32),
        "class_w": s * jax.random.normal(ks[2], (hidden_dim, num_classes + 1), jnp.float32),
        "class_b": s * jax.random.normal(ks[3], (num_classes + 1,), jnp.float32),
        "bbox_w1": s * jax.random.normal(ks[4], (hidden_dim, hidden_dim), jnp.float32),
        "bbox_b1": jnp.zeros((hidden_dim,), jnp.float32),
        "bbox_w2": s * jax.random.normal(ks[5], (hidden_dim, hidden_dim), jnp.float32),
        "bbox_b2": jnp.zeros((hidden_dim,), jnp.float32),
        "bbox_w3": s * jax.random.normal(ks[6], (hidden_dim, 4), jnp.float32),
        "bbox_b3": jnp.zeros((4,), jnp.float32),
        "query_embed": s * jax.random.normal(ks[7], (num_queries, hidden_dim), jnp.float32),
        "num_decoder_layers": num_decoder_layers,
    }


if __name__ == "__main__":
    key = jax.random.PRNGKey(0)
    k_feat, k_params = jax.random.split(key)

    # small shapes: batch=2, backbone channels=48, feature map 8x8,
    # hidden_dim=32, num_queries=8, num_classes=4, 2 decoder layers
    B, C_backbone, H, W = 2, 48, 8, 8
    hidden_dim, num_queries, num_classes, num_layers = 32, 8, 4, 2

    # backbone stand-in output (build_backbone is an external module)
    feat = jax.random.normal(k_feat, (B, C_backbone, H, W), jnp.float32)
    mask = jnp.zeros((B, H, W), dtype=jnp.bool_)  # no padded pixels

    params = make_params(k_params, C_backbone, hidden_dim, num_queries,
                         num_classes, num_layers)

    out = spdetr_forward(feat, mask, params, aux_loss=True)
    out = jax.block_until_ready(out)

    assert out["pred_logits"].shape == (B, num_queries, num_classes + 1)
    assert out["pred_boxes"].shape == (B, num_queries, 4)
    assert len(out["aux_outputs"]) == num_layers - 1
    assert bool(jnp.all(jnp.isfinite(out["pred_logits"])))
    assert bool(jnp.all((out["pred_boxes"] >= 0.0) & (out["pred_boxes"] <= 1.0)))
    print("KERNEL_OK")
</pallas_src>

<mosaic_0001>
module attributes {stable_mosaic.version = 11 : i64} {
  func.func @_input_proj_kernel(%arg0: i32, %arg1: i32, %arg2: memref<1x48x64xf32, #tpu.memory_space<vmem>>, %arg3: memref<32x48xbf16, #tpu.memory_space<vmem>>, %arg4: memref<32x1xf32, #tpu.memory_space<vmem>>, %arg5: memref<1x32x64xbf16, #tpu.memory_space<vmem>>) attributes {dimension_semantics = [#tpu.dimension_semantics<parallel>, #tpu.dimension_semantics<parallel>], iteration_bounds = array<i64: 2, 1>, scalar_prefetch = 0 : i64, scratch_operands = 0 : i64, tpu.core_type = #tpu.core_type<tc>, window_params = [{transform_indices = @transform_0, window_bounds = array<i64: 1, 48, 64>}, {pipeline_mode = #tpu.pipeline_mode<synchronous>, transform_indices = @transform_1, window_bounds = array<i64: 32, 48>}, {pipeline_mode = #tpu.pipeline_mode<synchronous>, transform_indices = @transform_2, window_bounds = array<i64: 32, 1>}, {transform_indices = @transform_3, window_bounds = array<i64: 1, 32, 64>}]} {
    %c0 = arith.constant 0 : index
    %c0_0 = arith.constant 0 : index
    %c0_1 = arith.constant 0 : index
    %0 = vector.load %arg2[%c0, %c0_0, %c0_1] : memref<1x48x64xf32, #tpu.memory_space<vmem>>, vector<1x48x64xf32>
    %1 = vector.shape_cast %0 : vector<1x48x64xf32> to vector<48x64xf32>
    %2 = arith.truncf %1 : vector<48x64xf32> to vector<48x64xbf16>
    %c0_2 = arith.constant 0 : index
    %c0_3 = arith.constant 0 : index
    %3 = vector.load %arg3[%c0_2, %c0_3] : memref<32x48xbf16, #tpu.memory_space<vmem>>, vector<32x48xbf16>
    %cst = arith.constant dense<0.000000e+00> : vector<32x64xf32>
    %4 = tpu.matmul %3, %2, %cst {dimension_numbers = #tpu.dot_dimension_numbers<[1], [0], [0], [1], [0, 0, 1, 1], [], []>} : vector<32x48xbf16>, vector<48x64xbf16>, vector<32x64xf32> -> vector<32x64xf32>
    %c0_4 = arith.constant 0 : index
    %c0_5 = arith.constant 0 : index
    %5 = vector.load %arg4[%c0_4, %c0_5] : memref<32x1xf32, #tpu.memory_space<vmem>>, vector<32x1xf32>
    %6 = vector.broadcast %5 : vector<32x1xf32> to vector<32x64xf32>
    %7 = arith.addf %4, %6 : vector<32x64xf32>
    %8 = arith.truncf %7 : vector<32x64xf32> to vector<32x64xbf16>
    %c0_6 = arith.constant 0 : index
    %c0_7 = arith.constant 0 : index
    %c0_8 = arith.constant 0 : index
    %9 = vector.load %arg5[%c0_6, %c0_7, %c0_8] : memref<1x32x64xbf16, #tpu.memory_space<vmem>>, vector<1x32x64xbf16>
    %10 = vector.shape_cast %9 : vector<1x32x64xbf16> to vector<32x64xbf16>
    %11 = vector.shape_cast %8 : vector<32x64xbf16> to vector<1x32x64xbf16>
    tpu.vector_store %arg5[%c0_6, %c0_7, %c0_8], %11 {strides = array<i32>} : memref<1x32x64xbf16, #tpu.memory_space<vmem>>, vector<1x32x64xbf16>,
    return
  }
  func.func @transform_0(%arg0: i32, %arg1: i32) -> (i32, i32, i32) {
    %c0_i32 = arith.constant 0 : i32
    %c0_i32_0 = arith.constant 0 : i32
    return %arg0, %c0_i32, %arg1 : i32, i32, i32
  }
  func.func @transform_1(%arg0: i32, %arg1: i32) -> (i32, i32) {
    %c0_i32 = arith.constant 0 : i32
    %c0_i32_0 = arith.constant 0 : i32
    %c0_i32_1 = arith.constant 0 : i32
    return %c0_i32, %c0_i32_0 : i32, i32
  }
  func.func @transform_2(%arg0: i32, %arg1: i32) -> (i32, i32) {
    %c0_i32 = arith.constant 0 : i32
    %c0_i32_0 = arith.constant 0 : i32
    %c0_i32_1 = arith.constant 0 : i32
    return %c0_i32, %c0_i32_0 : i32, i32
  }
  func.func @transform_3(%arg0: i32, %arg1: i32) -> (i32, i32, i32) {
    %c0_i32 = arith.constant 0 : i32
    %c0_i32_0 = arith.constant 0 : i32
    return %arg0, %c0_i32, %arg1 : i32, i32, i32
  }
}

</mosaic_0001>

<llo_original>
// kernel: tpu_custom_call.1
$region0: #{tpu_custom_call.1}
  #allocation0 [shape = 'u32[]', space=smem, size = 0x4, offset = 0x4, fixed_abs, tag = 'smem constant byte address 0x4 - core index']
  #allocation1 [shape = 'u32[144,128]{1,0:T(1,128)}', space=vmem, size = 0x12000, scoped, tag = 'internal scratch']
  %s0 = inlined_call_operand.hbm [shape: f32[2,48,64], index: 0, kind: input, shape index: {}]
  %s1 = inlined_call_operand.vmem [shape: bf16[32,48], index: 1, kind: input, shape index: {}]
  %s2 = inlined_call_operand.vmem [shape: f32[32,1], index: 2, kind: input, shape index: {}]
  %s3 = inlined_call_operand.hbm [shape: bf16[2,32,64], index: 3, kind: output, shape index: {}]
  %s4 = sld [smem:[#allocation0]]
  $region49: #{tpu_custom_call.1} parent=0
    _
  %s6 = ssub.s32 1, %s4
  %s7 = scalar_select 0, %s6, %s4
  $region1: #{tpu_custom_call.1} parent=0
    #allocation2 [shape = 'u8[49152]{0}', space=vmem, size = 0xc000, scoped, tag = 'input window, operand 0']
    #allocation3 [shape = 's32[2]{0}', space=sflag, size = 0x8, scoped, tag = 'scoped memory for tpu_custom_call.1']
    #allocation4 [shape = 's32[2]{0}', space=sflag, size = 0x8, scoped, tag = 'scoped memory for tpu_custom_call.1']
    #allocation5 [shape = 'u8[16384]{0}', space=vmem, size = 0x4000, scoped, tag = 'output window, operand 0']
    %8 = vsyncpa [#allocation3], 0
    %s9 = scalar_lea.sflag [#allocation3], 1
    %10 = vsyncpa %s9, 0
    %11 = vsyncpa [#allocation4], 0
    %s12 = scalar_lea.sflag [#allocation4], 1
    %13 = vsyncpa %s12, 0
    loop: start=0, step=1, limit=4
    $region2: #{tpu_custom_call.1} parent=1 // loop_pre_header
      _
    $region3: #{tpu_custom_call.1} parent=1 // loop_header
      %s15 = sphi 0, %s19
      %p16 = scmp.ge.s32.totalorder %s15, 4
      %s22 = sphi 0, %s34
      %s23 = sphi 0, %s30
      %s24 = sphi 0, %s22
      %s25 = sphi 0, %s23
      %s26 = sphi 0, %s24
      %s27 = sphi 0, %s25
      %s39 = sphi 0, %s41
      %s42 = sphi 0, %s39
      %s43 = sphi 0, %s42
      %s59 = sphi 0, %s43
      %s63 = sphi 0, %s63
      %s65 = sphi 0, %s63
      %s66 = sphi 0, %s65
      %s80 = sphi 0, %s66
      %s84 = sphi 0, %s84
      %s86 = sphi 0, %s84
      %s87 = sphi 0, %s86
      %s101 = sphi 0, %s87
      %s109 = sphi 0, %s111
      %s112 = sphi 0, %s109
      %s113 = sphi 0, %s112
      %s129 = sphi 0, %s113
    $region4: #{tpu_custom_call.1} parent=1 // loop_header_branch
      %18 = sbr.rel (%p16) target = $region8
    $region5: #{tpu_custom_call.1} parent=1 // loop_body
      %s20 = ssub.s32 %s15, 1
      %s21 = ssub.s32 %s15, 2
      %s28 = sadd.s32 1, %s23
      %p29 = scmp.ge.s32.totalorder %s28, 1
      %s30 = scalar_select %p29, 0, %s28
      %s31 = sadd.s32 1, %s22
      %s32 = scalar_select %p29, %s31, %s22
      %p33 = scmp.ge.s32.totalorder %s32, 2
      %s34 = scalar_select %p33, 0, %s32
      %s35 = ssub.s32 %s22, %s34
      %s36 = ssub.s32 %s23, %s30
      %s37 = sor.u32 %s35, %s36
      %p38 = scmp.eq.s32.totalorder %s37, 0
      %s40 = sadd.s32 %s39, 1
      %s41 = scalar_select %p38, %s39, %s40
      %p44 = pneg %p38
      %p45 = scmp.eq.s32.totalorder %s15, 1
      %p46 = por %p44, %p45
      %p47 = scmp.ne.s32.totalorder %s39, %s42
      %p48 = scmp.eq.s32.totalorder %s15, 0
      %p49 = por %p47, %p48
      %p50 = scmp.ne.s32.totalorder %s39, %s42
      %p51 = scmp.eq.s32.totalorder %s20, 1
      %p52 = por %p50, %p51
      %p53 = scmp.ne.s32.totalorder %s42, %s43
      %p54 = scmp.eq.s32.totalorder %s20, 0
      %p55 = por %p53, %p54
      %p56 = scmp.ne.s32.totalorder %s42, %s43
      %p57 = scmp.eq.s32.totalorder %s21, 1
      %p58 = por %p56, %p57
      %p60 = scmp.ne.s32.totalorder %s43, %s59
      %p61 = scmp.eq.s32.totalorder %s21, 0
      %p62 = por %p60, %p61
      %s64 = sadd.s32 %s63, 1
      %p67 = scmp.eq.s32.totalorder %s15, 1
      %p68 = scmp.ne.s32.totalorder %s63, %s65
      %p69 = scmp.eq.s32.totalorder %s15, 0
      %p70 = por %p68, %p69
      %p71 = scmp.ne.s32.totalorder %s63, %s65
      %p72 = scmp.eq.s32.totalorder %s20, 1
      %p73 = por %p71, %p72
      %p74 = scmp.ne.s32.totalorder %s65, %s66
      %p75 = scmp.eq.s32.totalorder %s20, 0
      %p76 = por %p74, %p75
      %p77 = scmp.ne.s32.totalorder %s65, %s66
      %p78 = scmp.eq.s32.totalorder %s21, 1
      %p79 = por %p77, %p78
      %p81 = scmp.ne.s32.totalorder %s66, %s80
      %p82 = scmp.eq.s32.totalorder %s21, 0
      %p83 = por %p81, %p82
      %s85 = sadd.s32 %s84, 1
      %p88 = scmp.eq.s32.totalorder %s15, 1
      %p89 = scmp.ne.s32.totalorder %s84, %s86
      %p90 = scmp.eq.s32.totalorder %s15, 0
      %p91 = por %p89, %p90
      %p92 = scmp.ne.s32.totalorder %s84, %s86
      %p93 = scmp.eq.s32.totalorder %s20, 1
      %p94 = por %p92, %p93
      %p95 = scmp.ne.s32.totalorder %s86, %s87
      %p96 = scmp.eq.s32.totalorder %s20, 0
      %p97 = por %p95, %p96
      %p98 = scmp.ne.s32.totalorder %s86, %s87
      %p99 = scmp.eq.s32.totalorder %s21, 1
      %p100 = por %p98, %p99
      %p102 = scmp.ne.s32.totalorder %s87, %s101
      %p103 = scmp.eq.s32.totalorder %s21, 0
      %p104 = por %p102, %p103
      %s105 = ssub.s32 %s22, %s34
      %s106 = ssub.s32 %s23, %s30
      %s107 = sor.u32 %s105, %s106
      %p108 = scmp.eq.s32.totalorder %s107, 0
      %s110 = sadd.s32 %s109, 1
      %s111 = scalar_select %p108, %s109, %s110
      %p114 = pneg %p108
      %p115 = scmp.eq.s32.totalorder %s15, 1
      %p116 = por %p114, %p115
      %p117 = scmp.ne.s32.totalorder %s109, %s112
      %p118 = scmp.eq.s32.totalorder %s15, 0
      %p119 = por %p117, %p118
      %p120 = scmp.ne.s32.totalorder %s109, %s112
      %p121 = scmp.eq.s32.totalorder %s20, 1
      %p122 = por %p120, %p121
      %p123 = scmp.ne.s32.totalorder %s112, %s113
      %p124 = scmp.eq.s32.totalorder %s20, 0
      %p125 = por %p123, %p124
      %p126 = scmp.ne.s32.totalorder %s112, %s113
      %p127 = scmp.eq.s32.totalorder %s21, 1
      %p128 = por %p126, %p127
      %p130 = scmp.ne.s32.totalorder %s113, %s129
      %p131 = scmp.eq.s32.totalorder %s21, 0
      %p132 = por %p130, %p131
      %p133 = scmp.le.s32.totalorder 1, %s15
      %p134 = scmp.lt.s32.totalorder %s15, 3
      %p135 = pnand %p133, %p134
      %p136 = pneg %p135
      // Predicated region
      $region9: #{tpu_custom_call.1} parent=5 // pred_check
        _
      $region10: #{tpu_custom_call.1} parent=5 // pred_check_branch
        %138 = sbr.rel (%p135) target = $region12
      $region11: #{tpu_custom_call.1} parent=5 // pred_region
        %s139 = ssub.s32 %s15, 1
        // Predicated region
        $region13: #{tpu_custom_call.1} parent=11 // pred_check
          %p140 = pneg %p76
        $region14: #{tpu_custom_call.1} parent=11 // pred_check_branch
          %142 = sbr.rel (%p140) target = $region16
        $region15: #{tpu_custom_call.1} parent=11 // pred_region
          _
        $region16: #{tpu_custom_call.1} parent=11 // pred_fallthru
          _
        // Predicated region
        $region17: #{tpu_custom_call.1} parent=11 // pred_check
          %p143 = pneg %p97
        $region18: #{tpu_custom_call.1} parent=11 // pred_check_branch
          %145 = sbr.rel (%p143) target = $region20
        $region19: #{tpu_custom_call.1} parent=11 // pred_region
          _
        $region20: #{tpu_custom_call.1} parent=11 // pred_fallthru
          _
      $region12: #{tpu_custom_call.1} parent=5 // pred_fallthru
        _
      %p146 = scmp.lt.s32.totalorder %s15, 2
      // Predicated region
      $region21: #{tpu_custom_call.1} parent=5 // pred_check
        %p147 = pneg %p146
      $region22: #{tpu_custom_call.1} parent=5 // pred_check_branch
        %149 = sbr.rel (%p147) target = $region24
      $region23: #{tpu_custom_call.1} parent=5 // pred_region
        // Predicated region
        $region25: #{tpu_custom_call.1} parent=23 // pred_check
          %p150 = pneg %p49
        $region26: #{tpu_custom_call.1} parent=23 // pred_check_branch
          %152 = sbr.rel (%p150) target = $region28
        $region27: #{tpu_custom_call.1} parent=23 // pred_region
          %s153 = sand.u32 %s39, 1
          %s154 = scalar_lea.sflag [#allocation3], %s153
          %s155 = sand.u32 %s39, 1
          %s156 = smul.addr %s155, 48
          %s157 = scalar_lea.vmem [#allocation2], %s156
          %s159 = ssub.s32 768, 768
          %160 = vsyncadd %s154, %s159
          %s161 = smul.addr %s22, 6
          %s162 = sadd.s32 %s23, %s161
          %s163 = smul.addr %s162, 128
          %s164 = scalar_lea.hbm %s0, %s163
          %s165 = sshll.u32 %s157, 4
          %s166 = int_to_ptr.vmem [resolvable:$true] %s165
          %171 = dma.hbm_to_vmem [thread:$0]  %s164, 768, %s166, %s154, 128, 128, 8
        $region28: #{tpu_custom_call.1} parent=23 // pred_fallthru
          _
      $region24: #{tpu_custom_call.1} parent=5 // pred_fallthru
        _
      %p172 = scmp.le.s32.totalorder 1, %s15
      %p173 = scmp.lt.s32.totalorder %s15, 3
      %p174 = pnand %p172, %p173
      %p175 = pneg %p174
      // Predicated region
      $region29: #{tpu_custom_call.1} parent=5 // pred_check
        _
      $region30: #{tpu_custom_call.1} parent=5 // pred_check_branch
        %177 = sbr.rel (%p174) target = $region32
      $region31: #{tpu_custom_call.1} parent=5 // pred_region
        %s178 = ssub.s32 %s15, 1
        %s179 = sand.u32 %s42, 1
        %s180 = scalar_lea.sflag [#allocation3], %s179
        %s181 = sand.u32 %s42, 1
        %s182 = smul.addr %s181, 48
        %s183 = scalar_lea.vmem [#allocation2], %s182
        // Predicated region
        $region33: #{tpu_custom_call.1} parent=31 // pred_check
          %p184 = pneg %p55
        $region34: #{tpu_custom_call.1} parent=31 // pred_check_branch
          %186 = sbr.rel (%p184) target = $region36
        $region35: #{tpu_custom_call.1} parent=31 // pred_region
          %187 = dma.done %s180, 768
        $region36: #{tpu_custom_call.1} parent=31 // pred_fallthru
          _
        %s188 = sand.u32 %s42, 1
        %s189 = scalar_lea.sflag [#allocation3], %s188
        %s190 = sand.u32 %s42, 1
        %s191 = smul.addr %s190, 48
        %s192 = scalar_lea.vmem [#allocation2], %s191
        %p193 = pneg %p55
        %p194 = pneg %p52
        %p195 = pneg %p76
        %p196 = pneg %p73
        %p197 = pneg %p97
        %p198 = pneg %p94
        %p199 = pneg %p125
        %p200 = pneg %p122
        %s201 = sand.u32 %s112, 1
        %s202 = scalar_lea.sflag [#allocation4], %s201
        %s203 = sand.u32 %s112, 1
        %s204 = smul.addr %s203, 16
        %s205 = scalar_lea.vmem [#allocation5], %s204
        %v207 = vld [vmem:[%s183] sm:$0xff]
        %v208 = vld [vmem:[%s183 + $0x8] sm:$0xff]
        %v209 = vld [vmem:[%s183 + $0x10] sm:$0xff]
        %v210 = vld [vmem:[%s183 + $0x18] sm:$0xff]
        %v211 = vld [vmem:[%s183 + $0x20] sm:$0xff]
        %v212 = vld [vmem:[%s183 + $0x28] sm:$0xff]
        %v213 = vpack.c.bf16 %v208, %v207
        %v214 = vpack.c.bf16 %v210, %v209
        %v215 = vpack.c.bf16 %v212, %v211
        %v216 = vld [vmem:[%s1] sm:$0xf]
        %v217 = vld [vmem:[%s1 + $0x4] sm:$0xf]
        %v218 = vld [vmem:[%s1 + $0x8] sm:$0xf]
        %v219 = vld [vmem:[%s1 + $0xc] sm:$0xf]
        %v220 = vld [vmem:[%s2] sm:$0xff]
        %v221 = vld [vmem:[%s2 + $0x8] sm:$0xff]
        %v222 = vld [vmem:[%s2 + $0x10] sm:$0xff]
        %v223 = vld [vmem:[%s2 + $0x18] sm:$0xff]
        %225 = vset.pattern.permute.xlu0 0
        %226 = vperm.xlu0 %225, %v220
        %v227 = vpop.permute.xlu0 %226
        %230 = vset.pattern.permute.xlu0 0
        %231 = vperm.xlu0 %230, %v221
        %v232 = vpop.permute.xlu0 %231
        %235 = vset.pattern.permute.xlu0 0
        %236 = vperm.xlu0 %235, %v222
        %v237 = vpop.permute.xlu0 %236
        %240 = vset.pattern.permute.xlu0 0
        %241 = vperm.xlu0 %240, %v223
        %v242 = vpop.permute.xlu0 %241
        %v248 = vunpack.c.l.b16 %v216
        %v249 = vunpack.c.l.b16 %v217
        %v250 = vunpack.c.l.b16 %v218
        %v251 = vunpack.c.l.b16 %v219
        %v252 = vpack.c.b16 %v249, %v248
        %v253 = vpack.c.b16 %v251, %v250
        %vm254 = vcmask 392192
        %v256 = vsel %vm254, %v252, 0
        %v259 = vsel %vm254, %v253, 0
        %261 = vmatprep.subr.bf16.mxu0 0
        %262 = vmatpush1.bf16.msra.mxu0 %v213
        %263 = vmatprep.subr.bf16.mxu0 0
        %264 = vmatpush1.bf16.msra.mxu0 %v214
        %265 = vmatprep.subr.bf16.mxu0 0
        %266 = vmatpush1.bf16.msra.mxu0 %v215
        %267 = vmatprep.subr.bf16.mxu0 0
        %268 = vmatpush1.bf16.msra.mxu0 0
        %269 = vmatprep.subr.bf16.mxu0 0
        %270 = vmatpush1.bf16.msra.mxu0 0
        %271 = vmatprep.subr.bf16.mxu0 0
        %272 = vmatpush1.bf16.msra.mxu0 0
        %273 = vmatprep.subr.bf16.mxu0 0
        %274 = vmatpush1.bf16.msra.mxu0 0
        %275 = vmatprep.subr.bf16.mxu0 0
        %276 = vmatpush1.bf16.msra.mxu0 0
        %277 = vmatprep.subr.bf16.mxu0 0
        %278 = vmatpush1.bf16.msra.mxu0 0
        %279 = vmatprep.subr.bf16.mxu0 0
        %280 = vmatpush1.bf16.msra.mxu0 0
        %281 = vmatprep.subr.bf16.mxu0 0
        %282 = vmatpush1.bf16.msra.mxu0 0
        %283 = vmatprep.subr.bf16.mxu0 0
        %284 = vmatpush1.bf16.msra.mxu0 0
        %285 = vmatprep.subr.bf16.mxu0 0
        %286 = vmatpush1.bf16.msra.mxu0 0
        %287 = vmatprep.subr.bf16.mxu0 0
        %288 = vmatpush1.bf16.msra.mxu0 0
        %289 = vmatprep.subr.bf16.mxu0 0
        %290 = vmatpush1.bf16.msra.mxu0 0
        %291 = vmatprep.subr.bf16.mxu0 0
        %292 = vmatpush1.bf16.msra.mxu0 0
        %293 = vmatprep.mubr.bf16.mxu0 0
        %294 = vmatmul.mubr.bf16.gmra.mrb[0].mxu0 %v256
        %v295 = vpop.f32.mrb[0].mxu0
        %v296 = vadd.f32 %v227, %v295
        %v297 = vpop.f32.mrb[0].mxu0
        %v298 = vpop.f32.mrb[0].mxu0
        %v299 = vadd.f32 %v232, %v298
        %v300 = vpop.f32.mrb[0].mxu0
        %301 = vmatprep.mubr.bf16.mxu0 0
        %302 = vmatmul.mubr.bf16.gmra.mrb[0].mxu0 %v259
        %v303 = vpop.f32.mrb[0].mxu0
        %v304 = vadd.f32 %v237, %v303
        %v305 = vpop.f32.mrb[0].mxu0
        %v306 = vpop.f32.mrb[0].mxu0
        %v307 = vadd.f32 %v242, %v306
        %v308 = vpop.f32.mrb[0].mxu0
        %309 = vdwg.mxu0
        %v310 = vpack.c.bf16 %v299, %v296
        %v311 = vpack.c.bf16 %v307, %v304
        %v314 = vunpack.c.l.b16 %v310
        %v315 = vunpack.c.h.b16 %v310
        %v316 = vunpack.c.l.b16 %v311
        %v317 = vunpack.c.h.b16 %v311
        %v318 = vpack.c.b16 %v314, %v314
        %v319 = vpack.c.b16 %v315, %v315
        %v320 = vpack.c.b16 %v316, %v316
        %v321 = vpack.c.b16 %v317, %v317
        %vm326 = vcmask 519168
        %327 = vst.msk [vmem:[%s205] sm:$0xf] %vm326, %v318
        %328 = vst.msk [vmem:[%s205 + $0x4] sm:$0xf] %vm326, %v319
        %329 = vst.msk [vmem:[%s205 + $0x8] sm:$0xf] %vm326, %v320
        %330 = vst.msk [vmem:[%s205 + $0xc] sm:$0xf] %vm326, %v321
        %s331 = sand.u32 %s112, 1
        %s332 = scalar_lea.sflag [#allocation4], %s331
        %s333 = sand.u32 %s112, 1
        %s334 = smul.addr %s333, 16
        %s335 = scalar_lea.vmem [#allocation5], %s334
        // Predicated region
        $region37: #{tpu_custom_call.1} parent=31 // pred_check
          %p336 = pneg %p122
        $region38: #{tpu_custom_call.1} parent=31 // pred_check_branch
          %338 = sbr.rel (%p336) target = $region40
        $region39: #{tpu_custom_call.1} parent=31 // pred_region
          %s340 = ssub.s32 256, 256
          %341 = vsyncadd %s332, %s340
          %s342 = smul.addr %s24, 4
          %s343 = sadd.s32 %s25, %s342
          %s344 = smul.addr %s343, 64
          %s345 = scalar_lea.hbm %s3, %s344
          %s346 = sshll.u32 %s335, 4
          %s347 = int_to_ptr.vmem [resolvable:$true] %s346
          %352 = dma.vmem_to_hbm [thread:$0]  %s347, 256, %s345, %s332, 64, 64, 4
        $region40: #{tpu_custom_call.1} parent=31 // pred_fallthru
          _
      $region32: #{tpu_custom_call.1} parent=5 // pred_fallthru
        _
      %p353 = scmp.le.s32.totalorder 2, %s15
      // Predicated region
      $region41: #{tpu_custom_call.1} parent=5 // pred_check
        %p354 = pneg %p353
      $region42: #{tpu_custom_call.1} parent=5 // pred_check_branch
        %356 = sbr.rel (%p354) target = $region44
      $region43: #{tpu_custom_call.1} parent=5 // pred_region
        %s357 = ssub.s32 %s15, 2
        // Predicated region
        $region45: #{tpu_custom_call.1} parent=43 // pred_check
          %p358 = pneg %p128
        $region46: #{tpu_custom_call.1} parent=43 // pred_check_branch
          %360 = sbr.rel (%p358) target = $region48
        $region47: #{tpu_custom_call.1} parent=43 // pred_region
          %s361 = sand.u32 %s113, 1
          %s362 = scalar_lea.sflag [#allocation4], %s361
          %s363 = sand.u32 %s113, 1
          %s364 = smul.addr %s363, 16
          %s365 = scalar_lea.vmem [#allocation5], %s364
          %366 = dma.done %s362, 256
        $region48: #{tpu_custom_call.1} parent=43 // pred_fallthru
          _
      $region44: #{tpu_custom_call.1} parent=5 // pred_fallthru
        _
    $region6: #{tpu_custom_call.1} parent=1 // loop_footer
      %s19 = sadd.s32 1, %s15
    $region7: #{tpu_custom_call.1} parent=1 // loop_footer_branch
      %14 = sbr.rel target = $region3
    $region8: #{tpu_custom_call.1} parent=1 // loop_exit
      _
    %367 = vsyncpa [#allocation3], 1
    %s368 = scalar_lea.sflag [#allocation3], 1
    %369 = vsyncpa %s368, 1
    %370 = vsyncpa [#allocation4], 1
    %s371 = scalar_lea.sflag [#allocation4], 1
    %372 = vsyncpa %s371, 1

</llo_original>
